<compile_context>
chip_gen: v7x
topology: tpu7x:2x2x1
jax: 0.10.0
libtpu: 0.0.40
codegen_flags: <defaults>
</compile_context>

<pallas_src>
import functools

import jax
import jax.numpy as jnp
from jax.experimental import pallas as pl
from jax.experimental.pallas import tpu as pltpu


def _round_up(x, m):
    return ((x + m - 1) // m) * m


def actor_critic_kernel(x_ref, p_ref, o_ref, *, in_dim, in_pad, fused, out_cols):
    """Fused actor+critic 3-layer MLP.

    x_ref: (TB, in_dim) bf16
    p_ref: (in_pad + 2*fused + 16, fused) bf16 packed slab (W1 | W2 | W3 | bias)
    o_ref: (TB, out_cols) f32 — columns [0:num_actions] = logits, [num_actions] = value
    """
    x = x_ref[...]                                           # (TB, in_dim) bf16

    w1 = p_ref[0:in_dim, :]                                  # (in_dim, F) bf16
    w2 = p_ref[in_pad:in_pad + fused, :]                     # (F, F)      bf16
    w3 = p_ref[in_pad + fused:in_pad + 2 * fused, 0:out_cols]  # (F, out_cols)
    bias = p_ref[in_pad + 2 * fused:in_pad + 2 * fused + 16, :]  # (16, F) bf16
    b1 = bias[0:1, :].astype(jnp.float32)
    b2 = bias[1:2, :].astype(jnp.float32)
    b3 = bias[2:3, 0:out_cols].astype(jnp.float32)

    # bf16 MXU passes, f32 accumulation; elementwise work stays f32.
    h = jnp.dot(x, w1, preferred_element_type=jnp.float32) + b1
    h = jnp.maximum(h, 0.0).astype(jnp.bfloat16)
    h = jnp.dot(h, w2, preferred_element_type=jnp.float32) + b2
    h = jnp.maximum(h, 0.0).astype(jnp.bfloat16)
    o_ref[...] = jnp.dot(h, w3, preferred_element_type=jnp.float32) + b3


def pack_params(p, input_dim, num_actions, hidden_dim=64, dtype=jnp.bfloat16):
    """Pack the 12 per-layer arrays into one lane-dense, tile-aligned slab."""
    h = hidden_dim
    f = 2 * h
    assert f == 128, "lane-dense packing requires hidden_dim == 64"
    assert num_actions + 1 <= f, "num_actions + 1 must fit in the fused lane width"

    in_pad = _round_up(input_dim, 16)   # bf16 sublane-tile aligned section

    w1 = jnp.zeros((in_pad, f), jnp.float32)
    w1 = w1.at[:input_dim, :h].set(p["aw1"]).at[:input_dim, h:].set(p["cw1"])

    w2 = jnp.zeros((f, f), jnp.float32)
    w2 = w2.at[:h, :h].set(p["aw2"]).at[h:, h:].set(p["cw2"])

    w3 = jnp.zeros((f, f), jnp.float32)
    w3 = w3.at[:h, :num_actions].set(p["aw3"])
    w3 = w3.at[h:, num_actions:num_actions + 1].set(p["cw3"])

    bias = jnp.zeros((16, f), jnp.float32)
    bias = bias.at[0:1, :h].set(p["ab1"]).at[0:1, h:].set(p["cb1"])
    bias = bias.at[1:2, :h].set(p["ab2"]).at[1:2, h:].set(p["cb2"])
    bias = bias.at[2:3, :num_actions].set(p["ab3"])
    bias = bias.at[2:3, num_actions:num_actions + 1].set(p["cb3"])

    return jnp.concatenate([w1, w2, w3, bias], axis=0).astype(dtype)


@functools.partial(
    jax.jit,
    static_argnames=("input_dim", "num_actions", "hidden_dim", "block_batch"),
)
def actor_critic_forward(x, slab, input_dim, num_actions, hidden_dim=64,
                         block_batch=2048):
    """x: (batch, input_dim) f32/bf16; slab: packed bf16 params from pack_params."""
    batch = x.shape[0]
    assert x.shape[1] == input_dim
    fused = 2 * hidden_dim
    in_pad = _round_up(input_dim, 16)
    out_cols = _round_up(num_actions + 1, 8)
    assert out_cols <= fused
    p_rows = in_pad + 2 * fused + 16
    assert slab.shape == (p_rows, fused)

    xb = x.astype(jnp.bfloat16)

    # Large, bf16-tile-friendly batch tile; no wrapper-side padding of x —
    # Pallas masks the partial last tile.
    tb = max(8, min(block_batch, _round_up(batch, 16)))
    # v7x megacore: keep >=2 parallel grid steps when there is enough work.
    if batch >= 512 and pl.cdiv(batch, tb) < 2:
        tb = _round_up(pl.cdiv(batch, 2), 16)
    grid = (pl.cdiv(batch, tb),)

    cost = pl.CostEstimate(
        flops=2 * batch * (input_dim * fused + fused * fused + fused * out_cols),
        transcendentals=0,
        bytes_accessed=slab.size * 2 + batch * input_dim * 2 + batch * out_cols * 4,
    )

    kernel = functools.partial(
        actor_critic_kernel,
        in_dim=input_dim, in_pad=in_pad, fused=fused, out_cols=out_cols,
    )

    out = pl.pallas_call(
        kernel,
        out_shape=jax.ShapeDtypeStruct((batch, out_cols), jnp.float32),
        grid=grid,
        in_specs=[
            pl.BlockSpec((tb, input_dim), lambda i: (i, 0)),
            # Constant index_map -> weight slab stays VMEM-resident across steps.
            pl.BlockSpec((p_rows, fused), lambda i: (0, 0)),
        ],
        out_specs=pl.BlockSpec((tb, out_cols), lambda i: (i, 0)),
        compiler_params=pltpu.CompilerParams(
            dimension_semantics=("parallel",),
        ),
        cost_estimate=cost,
    )(xb, slab)

    logits = out[:, :num_actions]
    value = out[:, num_actions:num_actions + 1]
    return logits, value


def init_params(key, input_dim, num_actions, hidden_dim=64):
    """Deterministic synthetic init matching nn.Linear shapes (stored (in, out))."""
    keys = jax.random.split(key, 12)

    def linear(kw, kb, fan_in, fan_out):
        bound = 1.0 / jnp.sqrt(fan_in)
        w = jax.random.uniform(kw, (fan_in, fan_out), jnp.float32, -bound, bound)
        b = jax.random.uniform(kb, (1, fan_out), jnp.float32, -bound, bound)
        return w, b

    aw1, ab1 = linear(keys[0], keys[1], input_dim, hidden_dim)
    aw2, ab2 = linear(keys[2], keys[3], hidden_dim, hidden_dim)
    aw3, ab3 = linear(keys[4], keys[5], hidden_dim, num_actions)
    cw1, cb1 = linear(keys[6], keys[7], input_dim, hidden_dim)
    cw2, cb2 = linear(keys[8], keys[9], hidden_dim, hidden_dim)
    cw3, cb3 = linear(keys[10], keys[11], hidden_dim, 1)

    return dict(
        aw1=aw1, ab1=ab1, aw2=aw2, ab2=ab2, aw3=aw3, ab3=ab3,
        cw1=cw1, cb1=cb1, cw2=cw2, cb2=cb2, cw3=cw3, cb3=cb3,
    )


def reference_forward(x, p, emulate_bf16=True):
    """Pure-JAX reference.

    emulate_bf16=True mirrors the kernel numerics exactly (bf16 matmul inputs,
    f32 accumulation, bf16 biases).  emulate_bf16=False is the full-f32
    (Precision.HIGHEST) PyTorch-equivalent baseline for a loose sanity check.
    """
    f32 = jnp.float32

    def cast(a):
        return a.astype(jnp.bfloat16) if emulate_bf16 else a.astype(f32)

    prec = None if emulate_bf16 else jax.lax.Precision.HIGHEST

    def mm(a, b):
        return jnp.dot(cast(a), cast(b), preferred_element_type=f32, precision=prec)

    def mlp(x, w1, b1, w2, b2, w3, b3):
        h = jnp.maximum(mm(x, w1) + cast(b1).astype(f32), 0.0)
        h = jnp.maximum(mm(h, w2) + cast(b2).astype(f32), 0.0)
        return mm(h, w3) + cast(b3).astype(f32)

    return (
        mlp(x, p["aw1"], p["ab1"], p["aw2"], p["ab2"], p["aw3"], p["ab3"]),
        mlp(x, p["cw1"], p["cb1"], p["cw2"], p["cb2"], p["cw3"], p["cb3"]),
    )


if __name__ == "__main__":
    batch, input_dim, num_actions, hidden_dim = 8, 16, 4, 64

    key = jax.random.PRNGKey(0)
    kx, kp, kx2 = jax.random.split(key, 3)
    x = jax.random.normal(kx, (batch, input_dim), jnp.float32)
    params = init_params(kp, input_dim, num_actions, hidden_dim)

    # Pack once (outside the per-call hot path).
    slab = pack_params(params, input_dim, num_actions, hidden_dim)

    logits, value = actor_critic_forward(x, slab, input_dim, num_actions, hidden_dim)
    jax.block_until_ready((logits, value))

    assert logits.shape == (batch, num_actions)
    assert value.shape == (batch, 1)

    # Match against a bf16-emulating reference (same numerics as the kernel) ...
    ref_l_bf, ref_v_bf = reference_forward(x, params, emulate_bf16=True)
    assert jnp.allclose(logits, ref_l_bf, atol=1e-2, rtol=1e-2)
    assert jnp.allclose(value, ref_v_bf, atol=1e-2, rtol=1e-2)
    # ... and loosely against the true f32 PyTorch-equivalent baseline.
    ref_l_f32, ref_v_f32 = reference_forward(x, params, emulate_bf16=False)
    assert jnp.allclose(logits, ref_l_f32, atol=5e-2, rtol=5e-2)
    assert jnp.allclose(value, ref_v_f32, atol=5e-2, rtol=5e-2)

    # Partial-last-tile path: batch not a multiple of the batch tile, no
    # wrapper-side padding of x (invariant from the perf review).
    batch2 = 200
    x2 = jax.random.normal(kx2, (batch2, input_dim), jnp.float32)
    l2, v2 = actor_critic_forward(
        x2, slab, input_dim, num_actions, hidden_dim, block_batch=64
    )
    jax.block_until_ready((l2, v2))
    r2l, r2v = reference_forward(x2, params, emulate_bf16=True)
    assert l2.shape == (batch2, num_actions) and v2.shape == (batch2, 1)
    assert jnp.allclose(l2, r2l, atol=1e-2, rtol=1e-2)
    assert jnp.allclose(v2, r2v, atol=1e-2, rtol=1e-2)

    print("KERNEL_OK")
</pallas_src>

<mosaic_0001>
module attributes {stable_mosaic.version = 11 : i64} {
  func.func @actor_critic_kernel(%arg0: i32, %arg1: memref<16x16xbf16, #tpu.memory_space<vmem>>, %arg2: memref<288x128xbf16, #tpu.memory_space<vmem>>, %arg3: memref<16x8xf32, #tpu.memory_space<vmem>>) attributes {dimension_semantics = [#tpu.dimension_semantics<parallel>], iteration_bounds = array<i64: 1>, scalar_prefetch = 0 : i64, scratch_operands = 0 : i64, tpu.core_type = #tpu.core_type<tc>, window_params = [{transform_indices = @transform_0, window_bounds = array<i64: 16, 16>}, {pipeline_mode = #tpu.pipeline_mode<synchronous>, transform_indices = @transform_1, window_bounds = array<i64: 288, 128>}, {transform_indices = @transform_2, window_bounds = array<i64: 16, 8>}]} {
    %c0 = arith.constant 0 : index
    %c0_0 = arith.constant 0 : index
    %0 = vector.load %arg1[%c0, %c0_0] : memref<16x16xbf16, #tpu.memory_space<vmem>>, vector<16x16xbf16>
    %c0_1 = arith.constant 0 : index
    %c0_2 = arith.constant 0 : index
    %1 = vector.load %arg2[%c0_1, %c0_2] : memref<288x128xbf16, #tpu.memory_space<vmem>>, vector<16x128xbf16>
    %c16 = arith.constant 16 : index
    %c0_3 = arith.constant 0 : index
    %2 = vector.load %arg2[%c16, %c0_3] : memref<288x128xbf16, #tpu.memory_space<vmem>>, vector<128x128xbf16>
    %c144 = arith.constant 144 : index
    %c0_4 = arith.constant 0 : index
    %3 = vector.load %arg2[%c144, %c0_4] : memref<288x128xbf16, #tpu.memory_space<vmem>>, vector<128x8xbf16>
    %c272 = arith.constant 272 : index
    %c0_5 = arith.constant 0 : index
    %4 = vector.load %arg2[%c272, %c0_5] : memref<288x128xbf16, #tpu.memory_space<vmem>>, vector<16x128xbf16>
    %5 = vector.extract_strided_slice %4 {offsets = [0, 0], sizes = [1, 128], strides = [1, 1]} : vector<16x128xbf16> to vector<1x128xbf16>
    %6 = arith.extf %5 : vector<1x128xbf16> to vector<1x128xf32>
    %7 = vector.extract_strided_slice %4 {offsets = [1, 0], sizes = [1, 128], strides = [1, 1]} : vector<16x128xbf16> to vector<1x128xbf16>
    %8 = arith.extf %7 : vector<1x128xbf16> to vector<1x128xf32>
    %9 = vector.extract_strided_slice %4 {offsets = [2, 0], sizes = [1, 8], strides = [1, 1]} : vector<16x128xbf16> to vector<1x8xbf16>
    %10 = arith.extf %9 : vector<1x8xbf16> to vector<1x8xf32>
    %cst = arith.constant dense<0.000000e+00> : vector<16x128xf32>
    %11 = tpu.matmul %0, %1, %cst {dimension_numbers = #tpu.dot_dimension_numbers<[1], [0], [0], [1], [0, 0, 1, 1], [], []>} : vector<16x16xbf16>, vector<16x128xbf16>, vector<16x128xf32> -> vector<16x128xf32>
    %12 = vector.broadcast %6 : vector<1x128xf32> to vector<16x128xf32>
    %13 = arith.addf %11, %12 : vector<16x128xf32>
    %cst_6 = arith.constant 0.000000e+00 : f32
    %14 = vector.broadcast %cst_6 : f32 to vector<16x128xf32>
    %15 = arith.maximumf %13, %14 : vector<16x128xf32>
    %16 = arith.truncf %15 : vector<16x128xf32> to vector<16x128xbf16>
    %cst_7 = arith.constant dense<0.000000e+00> : vector<16x128xf32>
    %17 = tpu.matmul %16, %2, %cst_7 {dimension_numbers = #tpu.dot_dimension_numbers<[1], [0], [0], [1], [0, 0, 1, 1], [], []>} : vector<16x128xbf16>, vector<128x128xbf16>, vector<16x128xf32> -> vector<16x128xf32>
    %18 = vector.broadcast %8 : vector<1x128xf32> to vector<16x128xf32>
    %19 = arith.addf %17, %18 : vector<16x128xf32>
    %cst_8 = arith.constant 0.000000e+00 : f32
    %20 = vector.broadcast %cst_8 : f32 to vector<16x128xf32>
    %21 = arith.maximumf %19, %20 : vector<16x128xf32>
    %22 = arith.truncf %21 : vector<16x128xf32> to vector<16x128xbf16>
    %cst_9 = arith.constant dense<0.000000e+00> : vector<16x8xf32>
    %23 = tpu.matmul %22, %3, %cst_9 {dimension_numbers = #tpu.dot_dimension_numbers<[1], [0], [0], [1], [0, 0, 1, 1], [], []>} : vector<16x128xbf16>, vector<128x8xbf16>, vector<16x8xf32> -> vector<16x8xf32>
    %24 = vector.broadcast %10 : vector<1x8xf32> to vector<16x8xf32>
    %25 = arith.addf %23, %24 : vector<16x8xf32>
    %c0_10 = arith.constant 0 : index
    %c0_11 = arith.constant 0 : index
    %26 = vector.load %arg3[%c0_10, %c0_11] : memref<16x8xf32, #tpu.memory_space<vmem>>, vector<16x8xf32>
    tpu.vector_store %arg3[%c0_10, %c0_11], %25 {strides = array<i32>} : memref<16x8xf32, #tpu.memory_space<vmem>>, vector<16x8xf32>,
    return
  }
  func.func @transform_0(%arg0: i32) -> (i32, i32) {
    %c0_i32 = arith.constant 0 : i32
    %c0_i32_0 = arith.constant 0 : i32
    return %arg0, %c0_i32 : i32, i32
  }
  func.func @transform_1(%arg0: i32) -> (i32, i32) {
    %c0_i32 = arith.constant 0 : i32
    %c0_i32_0 = arith.constant 0 : i32
    %c0_i32_1 = arith.constant 0 : i32
    return %c0_i32, %c0_i32_0 : i32, i32
  }
  func.func @transform_2(%arg0: i32) -> (i32, i32) {
    %c0_i32 = arith.constant 0 : i32
    %c0_i32_0 = arith.constant 0 : i32
    return %arg0, %c0_i32 : i32, i32
  }
}

</mosaic_0001>

<llo_original>
// kernel: actor_critic_forward.1
$region0: #{actor_critic_forward.1}
  #allocation0 [shape = 'u32[]', space=smem, size = 0x4, offset = 0x4, fixed_abs, tag = 'smem constant byte address 0x4 - core index']
  #allocation1 [shape = 'u32[144,128]{1,0:T(1,128)}', space=vmem, size = 0x12000, scoped, tag = 'internal scratch']
  %s0 = inlined_call_operand.vmem [shape: bf16[8,16], index: 0, kind: input, shape index: {}]
  %s1 = inlined_call_operand.hbm [shape: bf16[288,128], index: 1, kind: input, shape index: {}]
  %s2 = inlined_call_operand.vmem [shape: f32[8,8], index: 2, kind: output, shape index: {}]
  %s3 = sld [smem:[#allocation0]]
  $region56: #{actor_critic_forward.1} parent=0
    _
  %s5 = ssub.s32 1, %s3
  %s6 = scalar_select 0, %s5, %s3
  $region1: #{actor_critic_forward.1} parent=0
    #allocation2 [shape = 'u8[73728]{0}', space=vmem, size = 0x12000, scoped, tag = 'input window, operand 1, single buffered']
    #allocation3 [shape = 's32[1]{0}', space=sflag, size = 0x4, scoped, tag = 'scoped memory for actor_critic_forward.1']
    #allocation4 [shape = 'u8[8192]{0}', space=vmem, size = 0x2000, scoped, tag = 'output window, operand 0, single buffered']
    %7 = vsyncpa [#allocation3], 0
    // Predicated region
    $region2: #{actor_critic_forward.1} parent=1 // pred_check
      _
    $region3: #{actor_critic_forward.1} parent=1 // pred_check_branch
      %9 = sbr.rel (0) target = $region5
    $region4: #{actor_critic_forward.1} parent=1 // pred_region
      _
    $region5: #{actor_critic_forward.1} parent=1 // pred_fallthru
      _
    // Predicated region
    $region6: #{actor_critic_forward.1} parent=1 // pred_check
      _
    $region7: #{actor_critic_forward.1} parent=1 // pred_check_branch
      %11 = sbr.rel (0) target = $region9
    $region8: #{actor_critic_forward.1} parent=1 // pred_region
      %s13 = ssub.s32 2304, 2304
      %14 = vsyncadd [#allocation3], %s13
      %s15 = sshll.u32 [#allocation2], 4
      %s16 = int_to_ptr.vmem [resolvable:$true] %s15
      %21 = dma.hbm_to_vmem [thread:$0]  %s1, 2304, %s16, [#allocation3], 64, 64, 4
    $region9: #{actor_critic_forward.1} parent=1 // pred_fallthru
      _
    // Predicated region
    $region10: #{actor_critic_forward.1} parent=1 // pred_check
      _
    $region11: #{actor_critic_forward.1} parent=1 // pred_check_branch
      %23 = sbr.rel (0) target = $region13
    $region12: #{actor_critic_forward.1} parent=1 // pred_region
      %24 = dma.done [#allocation3], 2304
    $region13: #{actor_critic_forward.1} parent=1 // pred_fallthru
      _
    %v26 = vld [vmem:[%s0] sm:$0xf]
    %v27 = vld [vmem:[%s0 + $0x4] sm:$0xf]
    %v28 = vld [vmem:[#allocation2] sm:$0xf]
    %v29 = vld [vmem:[#allocation2 + $0x4] sm:$0xf]
    %v30 = vld [vmem:[#allocation2 + $0x8] sm:$0xf]
    %v31 = vld [vmem:[#allocation2 + $0xc] sm:$0xf]
    %v32 = vld [vmem:[#allocation2 + $0x10] sm:$0xf]
    %v33 = vld [vmem:[#allocation2 + $0x14] sm:$0xf]
    %v34 = vld [vmem:[#allocation2 + $0x18] sm:$0xf]
    %v35 = vld [vmem:[#allocation2 + $0x1c] sm:$0xf]
    %v36 = vld [vmem:[#allocation2 + $0x20] sm:$0xf]
    %v37 = vld [vmem:[#allocation2 + $0x24] sm:$0xf]
    %v38 = vld [vmem:[#allocation2 + $0x28] sm:$0xf]
    %v39 = vld [vmem:[#allocation2 + $0x2c] sm:$0xf]
    %v40 = vld [vmem:[#allocation2 + $0x30] sm:$0xf]
    %v41 = vld [vmem:[#allocation2 + $0x34] sm:$0xf]
    %v42 = vld [vmem:[#allocation2 + $0x38] sm:$0xf]
    %v43 = vld [vmem:[#allocation2 + $0x3c] sm:$0xf]
    %v44 = vld [vmem:[#allocation2 + $0x40] sm:$0xf]
    %v45 = vld [vmem:[#allocation2 + $0x44] sm:$0xf]
    %v46 = vld [vmem:[#allocation2 + $0x48] sm:$0xf]
    %v47 = vld [vmem:[#allocation2 + $0x4c] sm:$0xf]
    %v48 = vld [vmem:[#allocation2 + $0x50] sm:$0xf]
    %v49 = vld [vmem:[#allocation2 + $0x54] sm:$0xf]
    %v50 = vld [vmem:[#allocation2 + $0x58] sm:$0xf]
    %v51 = vld [vmem:[#allocation2 + $0x5c] sm:$0xf]
    %v52 = vld [vmem:[#allocation2 + $0x60] sm:$0xf]
    %v53 = vld [vmem:[#allocation2 + $0x64] sm:$0xf]
    %v54 = vld [vmem:[#allocation2 + $0x68] sm:$0xf]
    %v55 = vld [vmem:[#allocation2 + $0x6c] sm:$0xf]
    %v56 = vld [vmem:[#allocation2 + $0x70] sm:$0xf]
    %v57 = vld [vmem:[#allocation2 + $0x74] sm:$0xf]
    %v58 = vld [vmem:[#allocation2 + $0x78] sm:$0xf]
    %v59 = vld [vmem:[#allocation2 + $0x7c] sm:$0xf]
    %v60 = vld [vmem:[#allocation2 + $0x80] sm:$0xf]
    %v61 = vld [vmem:[#allocation2 + $0x84] sm:$0xf]
    %v62 = vld [vmem:[#allocation2 + $0x88] sm:$0xf]
    %v63 = vunpack.c.l.bf16 %v62
    %v64 = vlaneseq
    %v65 = vshrl.u32 %v64, 7
    %v66 = vsub.s32 0, %v65
    %v67 = vrot.slane %v63, %v66
    %v70 = vunpack.c.l.b16 %v26
    %v71 = vunpack.c.l.b16 %v27
    %v72 = vpack.c.b16 %v71, %v70
    %v75 = vunpack.c.l.b16 %v28
    %v76 = vunpack.c.l.b16 %v29
    %v77 = vpack.c.b16 %v76, %v75
    %vm79 = vcmask 130048
    %v81 = vsel %vm79, %v72, 0
    %83 = vmatprep.subr.bf16.mxu0 0
    %84 = vmatpush1.bf16.msra.mxu0 %v77
    %85 = vmatprep.subr.bf16.mxu0 0
    %86 = vmatpush1.bf16.msra.mxu0 0
    %87 = vmatprep.subr.bf16.mxu0 0
    %88 = vmatpush1.bf16.msra.mxu0 0
    %89 = vmatprep.subr.bf16.mxu0 0
    %90 = vmatpush1.bf16.msra.mxu0 0
    %91 = vmatprep.subr.bf16.mxu0 0
    %92 = vmatpush1.bf16.msra.mxu0 0
    %93 = vmatprep.subr.bf16.mxu0 0
    %94 = vmatpush1.bf16.msra.mxu0 0
    %95 = vmatprep.subr.bf16.mxu0 0
    %96 = vmatpush1.bf16.msra.mxu0 0
    %97 = vmatprep.subr.bf16.mxu0 0
    %98 = vmatpush1.bf16.msra.mxu0 0
    %99 = vmatprep.subr.bf16.mxu0 0
    %100 = vmatpush1.bf16.msra.mxu0 0
    %101 = vmatprep.subr.bf16.mxu0 0
    %102 = vmatpush1.bf16.msra.mxu0 0
    %103 = vmatprep.subr.bf16.mxu0 0
    %104 = vmatpush1.bf16.msra.mxu0 0
    %105 = vmatprep.subr.bf16.mxu0 0
    %106 = vmatpush1.bf16.msra.mxu0 0
    %107 = vmatprep.subr.bf16.mxu0 0
    %108 = vmatpush1.bf16.msra.mxu0 0
    %109 = vmatprep.subr.bf16.mxu0 0
    %110 = vmatpush1.bf16.msra.mxu0 0
    %111 = vmatprep.subr.bf16.mxu0 0
    %112 = vmatpush1.bf16.msra.mxu0 0
    %113 = vmatprep.subr.bf16.mxu0 0
    %114 = vmatpush1.bf16.msra.mxu0 0
    %115 = vmatprep.mubr.bf16.mxu0 0
    %116 = vmatmul.mubr.bf16.gmra.mrb[0].mxu0 %v81
    %v117 = vpop.f32.mrb[0].mxu0
    %v118 = vadd.f32 %v67, %v117
    %v119 = vpop.f32.mrb[0].mxu0
    %v120 = vpop.f32.mrb[0].mxu0
    %v121 = vadd.f32 %v67, %v120
    %v122 = vpop.f32.mrb[0].mxu0
    %123 = vdwg.mxu0
    %v124 = vmax.f32 %v118, 0.0
    %v125 = vmax.f32 %v121, 0.0
    %v126 = vpack.c.bf16 %v125, %v124
    %v127 = vlaneseq
    %v128 = vshrl.u32 %v127, 7
    %v129 = vsub.s32 1, %v128
    %v130 = vrot.slane %v63, %v129
    %v147 = vunpack.c.l.b16 %v30
    %v148 = vunpack.c.l.b16 %v31
    %v149 = vunpack.c.l.b16 %v32
    %v150 = vunpack.c.l.b16 %v33
    %v151 = vunpack.c.l.b16 %v34
    %v152 = vunpack.c.l.b16 %v35
    %v153 = vunpack.c.l.b16 %v36
    %v154 = vunpack.c.l.b16 %v37
    %v155 = vunpack.c.l.b16 %v38
    %v156 = vunpack.c.l.b16 %v39
    %v157 = vunpack.c.l.b16 %v40
    %v158 = vunpack.c.l.b16 %v41
    %v159 = vunpack.c.l.b16 %v42
    %v160 = vunpack.c.l.b16 %v43
    %v161 = vunpack.c.l.b16 %v44
    %v162 = vunpack.c.l.b16 %v45
    %v163 = vpack.c.b16 %v148, %v147
    %v164 = vpack.c.b16 %v150, %v149
    %v165 = vpack.c.b16 %v152, %v151
    %v166 = vpack.c.b16 %v154, %v153
    %v167 = vpack.c.b16 %v156, %v155
    %v168 = vpack.c.b16 %v158, %v157
    %v169 = vpack.c.b16 %v160, %v159
    %v170 = vpack.c.b16 %v162, %v161
    %179 = vmatprep.subr.bf16.mxu0 0
    %180 = vmatpush1.bf16.msra.mxu0 %v163
    %181 = vmatprep.subr.bf16.mxu0 0
    %182 = vmatpush1.bf16.msra.mxu0 %v164
    %183 = vmatprep.subr.bf16.mxu0 0
    %184 = vmatpush1.bf16.msra.mxu0 %v165
    %185 = vmatprep.subr.bf16.mxu0 0
    %186 = vmatpush1.bf16.msra.mxu0 %v166
    %187 = vmatprep.subr.bf16.mxu0 0
    %188 = vmatpush1.bf16.msra.mxu0 %v167
    %189 = vmatprep.subr.bf16.mxu0 0
    %190 = vmatpush1.bf16.msra.mxu0 %v168
    %191 = vmatprep.subr.bf16.mxu0 0
    %192 = vmatpush1.bf16.msra.mxu0 %v169
    %193 = vmatprep.subr.bf16.mxu0 0
    %194 = vmatpush1.bf16.msra.mxu0 %v170
    %195 = vmatprep.subr.bf16.mxu0 0
    %196 = vmatpush1.bf16.msra.mxu0 0
    %197 = vmatprep.subr.bf16.mxu0 0
    %198 = vmatpush1.bf16.msra.mxu0 0
    %199 = vmatprep.subr.bf16.mxu0 0
    %200 = vmatpush1.bf16.msra.mxu0 0
    %201 = vmatprep.subr.bf16.mxu0 0
    %202 = vmatpush1.bf16.msra.mxu0 0
    %203 = vmatprep.subr.bf16.mxu0 0
    %204 = vmatpush1.bf16.msra.mxu0 0
    %205 = vmatprep.subr.bf16.mxu0 0
    %206 = vmatpush1.bf16.msra.mxu0 0
    %207 = vmatprep.subr.bf16.mxu0 0
    %208 = vmatpush1.bf16.msra.mxu0 0
    %209 = vmatprep.subr.bf16.mxu0 0
    %210 = vmatpush1.bf16.msra.mxu0 0
    %211 = vmatprep.mubr.bf16.mxu0 0
    %212 = vmatmul.mubr.bf16.gmra.mrb[0].mxu0 %v126
    %v213 = vpop.f32.mrb[0].mxu0
    %v214 = vadd.f32 %v130, %v213
    %v215 = vpop.f32.mrb[0].mxu0
    %v216 = vpop.f32.mrb[0].mxu0
    %v217 = vadd.f32 %v130, %v216
    %v218 = vpop.f32.mrb[0].mxu0
    %219 = vdwg.mxu0
    %v220 = vmax.f32 %v214, 0.0
    %v221 = vmax.f32 %v217, 0.0
    %v222 = vpack.c.bf16 %v221, %v220
    %v223 = vlaneseq
    %v224 = vshrl.u32 %v223, 7
    %v225 = vsub.s32 2, %v224
    %v226 = vrot.slane %v63, %v225
    %v243 = vunpack.c.l.b16 %v46
    %v244 = vunpack.c.l.b16 %v47
    %v245 = vunpack.c.l.b16 %v48
    %v246 = vunpack.c.l.b16 %v49
    %v247 = vunpack.c.l.b16 %v50
    %v248 = vunpack.c.l.b16 %v51
    %v249 = vunpack.c.l.b16 %v52
    %v250 = vunpack.c.l.b16 %v53
    %v251 = vunpack.c.l.b16 %v54
    %v252 = vunpack.c.l.b16 %v55
    %v253 = vunpack.c.l.b16 %v56
    %v254 = vunpack.c.l.b16 %v57
    %v255 = vunpack.c.l.b16 %v58
    %v256 = vunpack.c.l.b16 %v59
    %v257 = vunpack.c.l.b16 %v60
    %v258 = vunpack.c.l.b16 %v61
    %v259 = vpack.c.b16 %v244, %v243
    %v260 = vpack.c.b16 %v246, %v245
    %v261 = vpack.c.b16 %v248, %v247
    %v262 = vpack.c.b16 %v250, %v249
    %v263 = vpack.c.b16 %v252, %v251
    %v264 = vpack.c.b16 %v254, %v253
    %v265 = vpack.c.b16 %v256, %v255
    %v266 = vpack.c.b16 %v258, %v257
    %275 = vmatprep.subr.bf16.mxu0 0
    %276 = vmatpush1.bf16.msra.mxu0 %v259
    %277 = vmatprep.subr.bf16.mxu0 0
    %278 = vmatpush1.bf16.msra.mxu0 %v260
    %279 = vmatprep.subr.bf16.mxu0 0
    %280 = vmatpush1.bf16.msra.mxu0 %v261
    %281 = vmatprep.subr.bf16.mxu0 0
    %282 = vmatpush1.bf16.msra.mxu0 %v262
    %283 = vmatprep.subr.bf16.mxu0 0
    %284 = vmatpush1.bf16.msra.mxu0 %v263
    %285 = vmatprep.subr.bf16.mxu0 0
    %286 = vmatpush1.bf16.msra.mxu0 %v264
    %287 = vmatprep.subr.bf16.mxu0 0
    %288 = vmatpush1.bf16.msra.mxu0 %v265
    %289 = vmatprep.subr.bf16.mxu0 0
    %290 = vmatpush1.bf16.msra.mxu0 %v266
    %291 = vmatprep.subr.bf16.mxu0 0
    %292 = vmatpush1.bf16.msra.mxu0 0
    %293 = vmatprep.subr.bf16.mxu0 0
    %294 = vmatpush1.bf16.msra.mxu0 0
    %295 = vmatprep.subr.bf16.mxu0 0
    %296 = vmatpush1.bf16.msra.mxu0 0
    %297 = vmatprep.subr.bf16.mxu0 0
    %298 = vmatpush1.bf16.msra.mxu0 0
    %299 = vmatprep.subr.bf16.mxu0 0
    %300 = vmatpush1.bf16.msra.mxu0 0
    %301 = vmatprep.subr.bf16.mxu0 0
    %302 = vmatpush1.bf16.msra.mxu0 0
    %303 = vmatprep.subr.bf16.mxu0 0
    %304 = vmatpush1.bf16.msra.mxu0 0
    %305 = vmatprep.subr.bf16.mxu0 0
    %306 = vmatpush1.bf16.msra.mxu0 0
    %307 = vmatprep.mubr.bf16.mxu0 0
    %308 = vmatmul.mubr.bf16.gmra.mrb[0].mxu0 %v222
    %v309 = vpop.f32.mrb[0].mxu0
    %v310 = vadd.f32 %v226, %v309
    %v311 = vpop.f32.mrb[0].mxu0
    %v312 = vpop.f32.mrb[0].mxu0
    %v313 = vadd.f32 %v226, %v312
    %v314 = vpop.f32.mrb[0].mxu0
    %315 = vdwg.mxu0
    %vm316 = vcmask 64512
    %317 = vst.msk [vmem:[#allocation4] sm:$0xff] %vm316, %v310
    %318 = vst.msk [vmem:[#allocation4 + $0x8] sm:$0xff] %vm316, %v313
    // Predicated region
    $region14: #{actor_critic_forward.1} parent=1 // pred_check
      _
    $region15: #{actor_critic_forward.1} parent=1 // pred_check_branch
      %320 = sbr.rel (0) target = $region17
    $region16: #{actor_critic_forward.1} parent=1 // pred_region
      // Predicated region
      $region18: #{actor_critic_forward.1} parent=16 // pred_check
        _
      $region19: #{actor_critic_forward.1} parent=16 // pred_check_branch
        %322 = sbr.rel (0) target = $region21
      $region20: #{actor_critic_forward.1} parent=16 // pred_region
        // Predicated region
        $region22: #{actor_critic_forward.1} parent=20 // pred_check
          _
        $region23: #{actor_critic_forward.1} parent=20 // pred_check_branch
          %324 = sbr.rel (0) target = $region25
        $region24: #{actor_critic_forward.1} parent=20 // pred_region
          // Predicated region
          $region37: #{actor_critic_forward.1} parent=24 // pred_check
            _
          $region38: #{actor_critic_forward.1} parent=24 // pred_check_branch
            %339 = sbr.rel (0) target = $region40
          $region39: #{actor_critic_forward.1} parent=24 // pred_region
            loop: start=0, step=1, limit=1
            $region41: #{actor_critic_forward.1} parent=39 // loop_pre_header
              _
            $region42: #{actor_critic_forward.1} parent=39 // loop_header
              %s341 = sphi 0, %s345
              %p342 = scmp.ge.s32.totalorder %s341, 1
              %s346 = sphi [#allocation4], [#allocation4]
              %s347 = sphi %s2, %s2
            $region43: #{actor_critic_forward.1} parent=39 // loop_header_branch
              %344 = sbr.rel (%p342) target = $region47
            $region44: #{actor_critic_forward.1} parent=39 // loop_body
              %v348 = vld [vmem:[%s346] sm:$0xff]
              %349 = vst [vmem:[%s347] sm:$0xff] %v348
            $region45: #{actor_critic_forward.1} parent=39 // loop_footer
              %s345 = sadd.s32 1, %s341
            $region46: #{actor_critic_forward.1} parent=39 // loop_footer_branch
              %340 = sbr.rel target = $region42
            $region47: #{actor_critic_forward.1} parent=39 // loop_exit
              _
          $region40: #{actor_critic_forward.1} parent=24 // pred_fallthru
            _
          // Predicated region
          $region48: #{actor_critic_forward.1} parent=24 // pred_check
            _
          $region49: #{actor_critic_forward.1} parent=24 // pred_check_branch
            %351 = sbr.rel target = $region51
          $region50: #{actor_critic_forward.1} parent=24 // pred_region
            _
          $region51: #{actor_critic_forward.1} parent=24 // pred_fallthru
            _
        $region25: #{actor_critic_forward.1} parent=20 // pred_fallthru
          _
        // Predicated region
        $region26: #{actor_critic_forward.1} parent=20 // pred_check
          _
        $region27: #{actor_critic_forward.1} parent=20 // pred_check_branch
          %326 = sbr.rel target = $region29
        $region28: #{actor_critic_forward.1} parent=20 // pred_region
          loop: start=0, step=1, limit=1
          $region30: #{actor_critic_forward.1} parent=28 // loop_pre_header
            _
          $region31: #{actor_critic_forward.1} parent=28 // loop_header
            %s329 = sphi 0, %s333
            %p330 = scmp.ge.s32.totalorder %s329, 1
            %s334 = sphi [#allocation4], [#allocation4]
            %s335 = sphi %s2, %s2
          $region32: #{actor_critic_forward.1} parent=28 // loop_header_branch
            %332 = sbr.rel (%p330) target = $region36
          $region33: #{actor_critic_forward.1} parent=28 // loop_body
            %v336 = vld [vmem:[%s334] sm:$0xff]
            %337 = vst [vmem:[%s335] sm:$0xff] %v336
          $region34: #{actor_critic_forward.1} parent=28 // loop_footer
            %s333 = sadd.s32 1, %s329
          $region35: #{actor_critic_forward.1} parent=28 // loop_footer_branch
            %328 = sbr.rel target = $region31
          $region36: #{actor_critic_forward.1} parent=28 // loop_exit
            _
        $region29: #{actor_critic_forward.1} parent=20 // pred_fallthru
          _
      $region21: #{actor_critic_forward.1} parent=16 // pred_fallthru
        _
      %352 = vnop
    $region17: #{actor_critic_forward.1} parent=1 // pred_fallthru
      _
    // Predicated region
    $region52: #{actor_critic_forward.1} parent=1 // pred_check
      _
    $region53: #{actor_critic_forward.1} parent=1 // pred_check_branch
      %354 = sbr.rel (0) target = $region55
    $region54: #{actor_critic_forward.1} parent=1 // pred_region
      _
    $region55: #{actor_critic_forward.1} parent=1 // pred_fallthru
      _
    %355 = vsyncpa [#allocation3], 1

</llo_original>
